<compile_context>
chip_gen: v7x
topology: tpu7x:2x2x1
jax: 0.10.0
libtpu: 0.0.40
codegen_flags: <defaults>
</compile_context>

<pallas_src>
import math
import jax
import jax.numpy as jnp
from jax.experimental import pallas as pl
from jax.experimental.pallas import tpu as pltpu


def fourier_encoding_kernel(w_ref, b_ref, e_ref, o_ref):
    # w_ref: (H+1,) f32 in SMEM, b_ref: (1,) f32 in SMEM
    # e_ref / o_ref: (TR, 128) f32 in VMEM (lane-dense tiles)
    e = e_ref[...]                                   # (TR, 128)
    h1 = w_ref.shape[0]                              # H + 1 (static)

    # j = 0 term: cos(0) == 1 contributes w[0]; fold the bias in as well.
    acc = jnp.full_like(e, w_ref[0] + b_ref[0])

    if h1 > 1:
        # One transcendental per element; Chebyshev recurrence for the rest:
        #   c_j = cos(j*pi*e),  c_{j+1} = 2*c1*c_j - c_{j-1}
        c1 = jnp.cos(math.pi * e)                    # EUP, once per element
        acc = acc + w_ref[1] * c1
        two_c1 = c1 + c1
        c_prev, c_cur = jnp.ones_like(e), c1
        for j in range(2, h1):                       # statically unrolled VALU MACs
            c_next = two_c1 * c_cur - c_prev
            acc = acc + w_ref[j] * c_next
            c_prev, c_cur = c_cur, c_next

    o_ref[...] = jax.nn.sigmoid(acc)                 # full-lane unmasked store


def fourier_encoding0(e, w, b, *, tile_rows=512, lanes=128):
    """FourierEncoding0.forward.  e: (N,), w: (1, H+1), b: (1,) -> (N, 1) f32."""
    n = e.shape[0]
    h1 = w.shape[1]
    assert tile_rows % 8 == 0, "tile_rows must be a multiple of 8 (sublane tiling)"

    # Lane-dense layout: put N on the 128-lane axis, pad, slice back afterwards.
    rows = pl.cdiv(n, lanes)
    tr = tile_rows if rows > tile_rows else rows     # full-dim block if small
    rows_p = pl.cdiv(rows, tr) * tr
    n_pad = rows_p * lanes

    e_pad = jnp.zeros((n_pad,), jnp.float32).at[:n].set(e.astype(jnp.float32))
    e2 = e_pad.reshape(rows_p, lanes)
    w1 = w.reshape(h1).astype(jnp.float32)
    b1 = b.reshape(1).astype(jnp.float32)

    out2 = pl.pallas_call(
        fourier_encoding_kernel,
        out_shape=jax.ShapeDtypeStruct((rows_p, lanes), jnp.float32),
        grid_spec=pltpu.PrefetchScalarGridSpec(
            num_scalar_prefetch=0,
            grid=(rows_p // tr,),
            in_specs=[
                pl.BlockSpec(memory_space=pltpu.MemorySpace.SMEM),   # weights (H+1,)
                pl.BlockSpec(memory_space=pltpu.MemorySpace.SMEM),   # bias (1,)
                pl.BlockSpec((tr, lanes), lambda i: (i, 0)),         # e tile
            ],
            out_specs=pl.BlockSpec((tr, lanes), lambda i: (i, 0)),
        ),
        compiler_params=pltpu.CompilerParams(
            dimension_semantics=("parallel",)),
    )(w1, b1, e2)

    # Padded rows hold harmless values; drop them and restore the (N, 1) shape.
    return out2.reshape(n_pad, 1)[:n]


def reference(e, w, b):
    h1 = w.shape[1]
    j = jnp.arange(h1, dtype=jnp.float32)
    feats = jnp.cos(e[:, None] * (j * math.pi)[None, :])
    return jax.nn.sigmoid(feats @ w[0][:, None] + b[0])


if __name__ == "__main__":
    hidden_dim = 32          # module's hidden_dim (small for the example)
    n = 300                  # number of eigenvalues (exercises pad + slice path)

    key = jax.random.PRNGKey(0)
    k_e, k_w, k_b = jax.random.split(key, 3)

    # deterministic synthetic inputs / parameters (xavier-uniform-ish init)
    e = jax.random.uniform(k_e, (n,), dtype=jnp.float32, minval=-1.0, maxval=1.0)
    fan_in = hidden_dim + 1
    bound = math.sqrt(6.0 / (fan_in + 1))
    w = jax.random.uniform(k_w, (1, fan_in), dtype=jnp.float32,
                           minval=-bound, maxval=bound)
    b = jax.random.uniform(k_b, (1,), dtype=jnp.float32,
                           minval=-1.0 / math.sqrt(fan_in),
                           maxval=1.0 / math.sqrt(fan_in))

    out = fourier_encoding0(e, w, b)
    out = jax.block_until_ready(out)

    ref = reference(e, w, b)
    assert out.shape == (n, 1)
    # Chebyshev recurrence drifts ~1e-5-level vs direct cos for H=32; use 1e-4.
    assert jnp.allclose(out, ref, atol=1e-4, rtol=1e-4), (out, ref)

    print("KERNEL_OK")
</pallas_src>

<mosaic_0001>
module attributes {stable_mosaic.version = 11 : i64} {
  func.func @fourier_encoding_kernel(%arg0: i32, %arg1: memref<33xf32, #tpu.memory_space<smem>>, %arg2: memref<1xf32, #tpu.memory_space<smem>>, %arg3: memref<3x128xf32, #tpu.memory_space<vmem>>, %arg4: memref<3x128xf32, #tpu.memory_space<vmem>>) attributes {dimension_semantics = [#tpu.dimension_semantics<parallel>], iteration_bounds = array<i64: 1>, scalar_prefetch = 0 : i64, scratch_operands = 0 : i64, tpu.core_type = #tpu.core_type<tc>, window_params = [{transform_indices = @transform_0, window_bounds = array<i64: 33>}, {transform_indices = @transform_1, window_bounds = array<i64: 1>}, {transform_indices = @transform_2, window_bounds = array<i64: 3, 128>}, {transform_indices = @transform_3, window_bounds = array<i64: 3, 128>}]} {
    %c0 = arith.constant 0 : index
    %c0_0 = arith.constant 0 : index
    %0 = vector.load %arg3[%c0, %c0_0] : memref<3x128xf32, #tpu.memory_space<vmem>>, vector<3x128xf32>
    %c0_1 = arith.constant 0 : index
    %1 = memref.load %arg1[%c0_1] : memref<33xf32, #tpu.memory_space<smem>>
    %c0_2 = arith.constant 0 : index
    %2 = memref.load %arg2[%c0_2] : memref<1xf32, #tpu.memory_space<smem>>
    %3 = arith.addf %1, %2 : f32
    %4 = vector.broadcast %3 : f32 to vector<3x128xf32>
    %cst = arith.constant 3.14159274 : f32
    %5 = vector.broadcast %cst : f32 to vector<3x128xf32>
    %6 = arith.mulf %5, %0 : vector<3x128xf32>
    %7 = math.cos %6 : vector<3x128xf32>
    %c1 = arith.constant 1 : index
    %8 = memref.load %arg1[%c1] : memref<33xf32, #tpu.memory_space<smem>>
    %9 = vector.broadcast %8 : f32 to vector<3x128xf32>
    %10 = arith.mulf %9, %7 : vector<3x128xf32>
    %11 = arith.addf %4, %10 : vector<3x128xf32>
    %12 = arith.addf %7, %7 : vector<3x128xf32>
    %cst_3 = arith.constant 1.000000e+00 : f32
    %13 = vector.broadcast %cst_3 : f32 to vector<3x128xf32>
    %14 = arith.mulf %12, %7 : vector<3x128xf32>
    %15 = arith.subf %14, %13 : vector<3x128xf32>
    %c2 = arith.constant 2 : index
    %16 = memref.load %arg1[%c2] : memref<33xf32, #tpu.memory_space<smem>>
    %17 = vector.broadcast %16 : f32 to vector<3x128xf32>
    %18 = arith.mulf %17, %15 : vector<3x128xf32>
    %19 = arith.addf %11, %18 : vector<3x128xf32>
    %20 = arith.mulf %12, %15 : vector<3x128xf32>
    %21 = arith.subf %20, %7 : vector<3x128xf32>
    %c3 = arith.constant 3 : index
    %22 = memref.load %arg1[%c3] : memref<33xf32, #tpu.memory_space<smem>>
    %23 = vector.broadcast %22 : f32 to vector<3x128xf32>
    %24 = arith.mulf %23, %21 : vector<3x128xf32>
    %25 = arith.addf %19, %24 : vector<3x128xf32>
    %26 = arith.mulf %12, %21 : vector<3x128xf32>
    %27 = arith.subf %26, %15 : vector<3x128xf32>
    %c4 = arith.constant 4 : index
    %28 = memref.load %arg1[%c4] : memref<33xf32, #tpu.memory_space<smem>>
    %29 = vector.broadcast %28 : f32 to vector<3x128xf32>
    %30 = arith.mulf %29, %27 : vector<3x128xf32>
    %31 = arith.addf %25, %30 : vector<3x128xf32>
    %32 = arith.mulf %12, %27 : vector<3x128xf32>
    %33 = arith.subf %32, %21 : vector<3x128xf32>
    %c5 = arith.constant 5 : index
    %34 = memref.load %arg1[%c5] : memref<33xf32, #tpu.memory_space<smem>>
    %35 = vector.broadcast %34 : f32 to vector<3x128xf32>
    %36 = arith.mulf %35, %33 : vector<3x128xf32>
    %37 = arith.addf %31, %36 : vector<3x128xf32>
    %38 = arith.mulf %12, %33 : vector<3x128xf32>
    %39 = arith.subf %38, %27 : vector<3x128xf32>
    %c6 = arith.constant 6 : index
    %40 = memref.load %arg1[%c6] : memref<33xf32, #tpu.memory_space<smem>>
    %41 = vector.broadcast %40 : f32 to vector<3x128xf32>
    %42 = arith.mulf %41, %39 : vector<3x128xf32>
    %43 = arith.addf %37, %42 : vector<3x128xf32>
    %44 = arith.mulf %12, %39 : vector<3x128xf32>
    %45 = arith.subf %44, %33 : vector<3x128xf32>
    %c7 = arith.constant 7 : index
    %46 = memref.load %arg1[%c7] : memref<33xf32, #tpu.memory_space<smem>>
    %47 = vector.broadcast %46 : f32 to vector<3x128xf32>
    %48 = arith.mulf %47, %45 : vector<3x128xf32>
    %49 = arith.addf %43, %48 : vector<3x128xf32>
    %50 = arith.mulf %12, %45 : vector<3x128xf32>
    %51 = arith.subf %50, %39 : vector<3x128xf32>
    %c8 = arith.constant 8 : index
    %52 = memref.load %arg1[%c8] : memref<33xf32, #tpu.memory_space<smem>>
    %53 = vector.broadcast %52 : f32 to vector<3x128xf32>
    %54 = arith.mulf %53, %51 : vector<3x128xf32>
    %55 = arith.addf %49, %54 : vector<3x128xf32>
    %56 = arith.mulf %12, %51 : vector<3x128xf32>
    %57 = arith.subf %56, %45 : vector<3x128xf32>
    %c9 = arith.constant 9 : index
    %58 = memref.load %arg1[%c9] : memref<33xf32, #tpu.memory_space<smem>>
    %59 = vector.broadcast %58 : f32 to vector<3x128xf32>
    %60 = arith.mulf %59, %57 : vector<3x128xf32>
    %61 = arith.addf %55, %60 : vector<3x128xf32>
    %62 = arith.mulf %12, %57 : vector<3x128xf32>
    %63 = arith.subf %62, %51 : vector<3x128xf32>
    %c10 = arith.constant 10 : index
    %64 = memref.load %arg1[%c10] : memref<33xf32, #tpu.memory_space<smem>>
    %65 = vector.broadcast %64 : f32 to vector<3x128xf32>
    %66 = arith.mulf %65, %63 : vector<3x128xf32>
    %67 = arith.addf %61, %66 : vector<3x128xf32>
    %68 = arith.mulf %12, %63 : vector<3x128xf32>
    %69 = arith.subf %68, %57 : vector<3x128xf32>
    %c11 = arith.constant 11 : index
    %70 = memref.load %arg1[%c11] : memref<33xf32, #tpu.memory_space<smem>>
    %71 = vector.broadcast %70 : f32 to vector<3x128xf32>
    %72 = arith.mulf %71, %69 : vector<3x128xf32>
    %73 = arith.addf %67, %72 : vector<3x128xf32>
    %74 = arith.mulf %12, %69 : vector<3x128xf32>
    %75 = arith.subf %74, %63 : vector<3x128xf32>
    %c12 = arith.constant 12 : index
    %76 = memref.load %arg1[%c12] : memref<33xf32, #tpu.memory_space<smem>>
    %77 = vector.broadcast %76 : f32 to vector<3x128xf32>
    %78 = arith.mulf %77, %75 : vector<3x128xf32>
    %79 = arith.addf %73, %78 : vector<3x128xf32>
    %80 = arith.mulf %12, %75 : vector<3x128xf32>
    %81 = arith.subf %80, %69 : vector<3x128xf32>
    %c13 = arith.constant 13 : index
    %82 = memref.load %arg1[%c13] : memref<33xf32, #tpu.memory_space<smem>>
    %83 = vector.broadcast %82 : f32 to vector<3x128xf32>
    %84 = arith.mulf %83, %81 : vector<3x128xf32>
    %85 = arith.addf %79, %84 : vector<3x128xf32>
    %86 = arith.mulf %12, %81 : vector<3x128xf32>
    %87 = arith.subf %86, %75 : vector<3x128xf32>
    %c14 = arith.constant 14 : index
    %88 = memref.load %arg1[%c14] : memref<33xf32, #tpu.memory_space<smem>>
    %89 = vector.broadcast %88 : f32 to vector<3x128xf32>
    %90 = arith.mulf %89, %87 : vector<3x128xf32>
    %91 = arith.addf %85, %90 : vector<3x128xf32>
    %92 = arith.mulf %12, %87 : vector<3x128xf32>
    %93 = arith.subf %92, %81 : vector<3x128xf32>
    %c15 = arith.constant 15 : index
    %94 = memref.load %arg1[%c15] : memref<33xf32, #tpu.memory_space<smem>>
    %95 = vector.broadcast %94 : f32 to vector<3x128xf32>
    %96 = arith.mulf %95, %93 : vector<3x128xf32>
    %97 = arith.addf %91, %96 : vector<3x128xf32>
    %98 = arith.mulf %12, %93 : vector<3x128xf32>
    %99 = arith.subf %98, %87 : vector<3x128xf32>
    %c16 = arith.constant 16 : index
    %100 = memref.load %arg1[%c16] : memref<33xf32, #tpu.memory_space<smem>>
    %101 = vector.broadcast %100 : f32 to vector<3x128xf32>
    %102 = arith.mulf %101, %99 : vector<3x128xf32>
    %103 = arith.addf %97, %102 : vector<3x128xf32>
    %104 = arith.mulf %12, %99 : vector<3x128xf32>
    %105 = arith.subf %104, %93 : vector<3x128xf32>
    %c17 = arith.constant 17 : index
    %106 = memref.load %arg1[%c17] : memref<33xf32, #tpu.memory_space<smem>>
    %107 = vector.broadcast %106 : f32 to vector<3x128xf32>
    %108 = arith.mulf %107, %105 : vector<3x128xf32>
    %109 = arith.addf %103, %108 : vector<3x128xf32>
    %110 = arith.mulf %12, %105 : vector<3x128xf32>
    %111 = arith.subf %110, %99 : vector<3x128xf32>
    %c18 = arith.constant 18 : index
    %112 = memref.load %arg1[%c18] : memref<33xf32, #tpu.memory_space<smem>>
    %113 = vector.broadcast %112 : f32 to vector<3x128xf32>
    %114 = arith.mulf %113, %111 : vector<3x128xf32>
    %115 = arith.addf %109, %114 : vector<3x128xf32>
    %116 = arith.mulf %12, %111 : vector<3x128xf32>
    %117 = arith.subf %116, %105 : vector<3x128xf32>
    %c19 = arith.constant 19 : index
    %118 = memref.load %arg1[%c19] : memref<33xf32, #tpu.memory_space<smem>>
    %119 = vector.broadcast %118 : f32 to vector<3x128xf32>
    %120 = arith.mulf %119, %117 : vector<3x128xf32>
    %121 = arith.addf %115, %120 : vector<3x128xf32>
    %122 = arith.mulf %12, %117 : vector<3x128xf32>
    %123 = arith.subf %122, %111 : vector<3x128xf32>
    %c20 = arith.constant 20 : index
    %124 = memref.load %arg1[%c20] : memref<33xf32, #tpu.memory_space<smem>>
    %125 = vector.broadcast %124 : f32 to vector<3x128xf32>
    %126 = arith.mulf %125, %123 : vector<3x128xf32>
    %127 = arith.addf %121, %126 : vector<3x128xf32>
    %128 = arith.mulf %12, %123 : vector<3x128xf32>
    %129 = arith.subf %128, %117 : vector<3x128xf32>
    %c21 = arith.constant 21 : index
    %130 = memref.load %arg1[%c21] : memref<33xf32, #tpu.memory_space<smem>>
    %131 = vector.broadcast %130 : f32 to vector<3x128xf32>
    %132 = arith.mulf %131, %129 : vector<3x128xf32>
    %133 = arith.addf %127, %132 : vector<3x128xf32>
    %134 = arith.mulf %12, %129 : vector<3x128xf32>
    %135 = arith.subf %134, %123 : vector<3x128xf32>
    %c22 = arith.constant 22 : index
    %136 = memref.load %arg1[%c22] : memref<33xf32, #tpu.memory_space<smem>>
    %137 = vector.broadcast %136 : f32 to vector<3x128xf32>
    %138 = arith.mulf %137, %135 : vector<3x128xf32>
    %139 = arith.addf %133, %138 : vector<3x128xf32>
    %140 = arith.mulf %12, %135 : vector<3x128xf32>
    %141 = arith.subf %140, %129 : vector<3x128xf32>
    %c23 = arith.constant 23 : index
    %142 = memref.load %arg1[%c23] : memref<33xf32, #tpu.memory_space<smem>>
    %143 = vector.broadcast %142 : f32 to vector<3x128xf32>
    %144 = arith.mulf %143, %141 : vector<3x128xf32>
    %145 = arith.addf %139, %144 : vector<3x128xf32>
    %146 = arith.mulf %12, %141 : vector<3x128xf32>
    %147 = arith.subf %146, %135 : vector<3x128xf32>
    %c24 = arith.constant 24 : index
    %148 = memref.load %arg1[%c24] : memref<33xf32, #tpu.memory_space<smem>>
    %149 = vector.broadcast %148 : f32 to vector<3x128xf32>
    %150 = arith.mulf %149, %147 : vector<3x128xf32>
    %151 = arith.addf %145, %150 : vector<3x128xf32>
    %152 = arith.mulf %12, %147 : vector<3x128xf32>
    %153 = arith.subf %152, %141 : vector<3x128xf32>
    %c25 = arith.constant 25 : index
    %154 = memref.load %arg1[%c25] : memref<33xf32, #tpu.memory_space<smem>>
    %155 = vector.broadcast %154 : f32 to vector<3x128xf32>
    %156 = arith.mulf %155, %153 : vector<3x128xf32>
    %157 = arith.addf %151, %156 : vector<3x128xf32>
    %158 = arith.mulf %12, %153 : vector<3x128xf32>
    %159 = arith.subf %158, %147 : vector<3x128xf32>
    %c26 = arith.constant 26 : index
    %160 = memref.load %arg1[%c26] : memref<33xf32, #tpu.memory_space<smem>>
    %161 = vector.broadcast %160 : f32 to vector<3x128xf32>
    %162 = arith.mulf %161, %159 : vector<3x128xf32>
    %163 = arith.addf %157, %162 : vector<3x128xf32>
    %164 = arith.mulf %12, %159 : vector<3x128xf32>
    %165 = arith.subf %164, %153 : vector<3x128xf32>
    %c27 = arith.constant 27 : index
    %166 = memref.load %arg1[%c27] : memref<33xf32, #tpu.memory_space<smem>>
    %167 = vector.broadcast %166 : f32 to vector<3x128xf32>
    %168 = arith.mulf %167, %165 : vector<3x128xf32>
    %169 = arith.addf %163, %168 : vector<3x128xf32>
    %170 = arith.mulf %12, %165 : vector<3x128xf32>
    %171 = arith.subf %170, %159 : vector<3x128xf32>
    %c28 = arith.constant 28 : index
    %172 = memref.load %arg1[%c28] : memref<33xf32, #tpu.memory_space<smem>>
    %173 = vector.broadcast %172 : f32 to vector<3x128xf32>
    %174 = arith.mulf %173, %171 : vector<3x128xf32>
    %175 = arith.addf %169, %174 : vector<3x128xf32>
    %176 = arith.mulf %12, %171 : vector<3x128xf32>
    %177 = arith.subf %176, %165 : vector<3x128xf32>
    %c29 = arith.constant 29 : index
    %178 = memref.load %arg1[%c29] : memref<33xf32, #tpu.memory_space<smem>>
    %179 = vector.broadcast %178 : f32 to vector<3x128xf32>
    %180 = arith.mulf %179, %177 : vector<3x128xf32>
    %181 = arith.addf %175, %180 : vector<3x128xf32>
    %182 = arith.mulf %12, %177 : vector<3x128xf32>
    %183 = arith.subf %182, %171 : vector<3x128xf32>
    %c30 = arith.constant 30 : index
    %184 = memref.load %arg1[%c30] : memref<33xf32, #tpu.memory_space<smem>>
    %185 = vector.broadcast %184 : f32 to vector<3x128xf32>
    %186 = arith.mulf %185, %183 : vector<3x128xf32>
    %187 = arith.addf %181, %186 : vector<3x128xf32>
    %188 = arith.mulf %12, %183 : vector<3x128xf32>
    %189 = arith.subf %188, %177 : vector<3x128xf32>
    %c31 = arith.constant 31 : index
    %190 = memref.load %arg1[%c31] : memref<33xf32, #tpu.memory_space<smem>>
    %191 = vector.broadcast %190 : f32 to vector<3x128xf32>
    %192 = arith.mulf %191, %189 : vector<3x128xf32>
    %193 = arith.addf %187, %192 : vector<3x128xf32>
    %194 = arith.mulf %12, %189 : vector<3x128xf32>
    %195 = arith.subf %194, %183 : vector<3x128xf32>
    %c32 = arith.constant 32 : index
    %196 = memref.load %arg1[%c32] : memref<33xf32, #tpu.memory_space<smem>>
    %197 = vector.broadcast %196 : f32 to vector<3x128xf32>
    %198 = arith.mulf %197, %195 : vector<3x128xf32>
    %199 = arith.addf %193, %198 : vector<3x128xf32>
    %200 = arith.negf %199 : vector<3x128xf32>
    %201 = math.exp %200 : vector<3x128xf32>
    %cst_4 = arith.constant 1.000000e+00 : f32
    %202 = vector.broadcast %cst_4 : f32 to vector<3x128xf32>
    %203 = arith.addf %202, %201 : vector<3x128xf32>
    %204 = arith.divf %202, %203 : vector<3x128xf32>
    %c0_5 = arith.constant 0 : index
    %c0_6 = arith.constant 0 : index
    %205 = vector.load %arg4[%c0_5, %c0_6] : memref<3x128xf32, #tpu.memory_space<vmem>>, vector<3x128xf32>
    tpu.vector_store %arg4[%c0_5, %c0_6], %204 {strides = array<i32>} : memref<3x128xf32, #tpu.memory_space<vmem>>, vector<3x128xf32>,
    return
  }
  func.func @transform_0(%arg0: i32) -> i32 {
    %c0_i32 = arith.constant 0 : i32
    %c0_i32_0 = arith.constant 0 : i32
    return %c0_i32 : i32
  }
  func.func @transform_1(%arg0: i32) -> i32 {
    %c0_i32 = arith.constant 0 : i32
    %c0_i32_0 = arith.constant 0 : i32
    return %c0_i32 : i32
  }
  func.func @transform_2(%arg0: i32) -> (i32, i32) {
    %c0_i32 = arith.constant 0 : i32
    %c0_i32_0 = arith.constant 0 : i32
    return %arg0, %c0_i32 : i32, i32
  }
  func.func @transform_3(%arg0: i32) -> (i32, i32) {
    %c0_i32 = arith.constant 0 : i32
    %c0_i32_0 = arith.constant 0 : i32
    return %arg0, %c0_i32 : i32, i32
  }
}

</mosaic_0001>

<llo_original>
// kernel: tpu_custom_call.1
$region0: #{tpu_custom_call.1}
  #allocation0 [shape = 'u32[]', space=smem, size = 0x4, offset = 0x4, fixed_abs, tag = 'smem constant byte address 0x4 - core index']
  #allocation1 [shape = 'u32[144,128]{1,0:T(1,128)}', space=vmem, size = 0x12000, scoped, tag = 'internal scratch']
  #allocation2 [shape = 'f32[1]{0:T(128)S(6)}', space=smem, size = 0x200, scoped, tag = 'scoped memory for tpu_custom_call.1']
  %s0 = inlined_call_operand.vmem [shape: f32[33], index: 0, kind: input, shape index: {}]
  %s1 = inlined_call_operand.<no memory space> [shape: f32[1], index: 1, kind: input, shape index: {}]
  %s2 = inlined_call_operand.vmem [shape: f32[3,128], index: 2, kind: input, shape index: {}]
  %s3 = inlined_call_operand.hbm [shape: f32[3,128], index: 3, kind: output, shape index: {}]
  %s4 = sld [smem:[#allocation0]]
  $region26: #{tpu_custom_call.1} parent=0
    _
  %s6 = ssub.s32 1, %s4
  %s7 = scalar_select 0, %s6, %s4
  %8 = sst [smem:[#allocation2]] %s1
  $region1: #{tpu_custom_call.1} parent=0
    #allocation3 [shape = 'u8[512]{0}', space=smem, size = 0x200, scoped, tag = 'input window, operand 0, single buffered']
    #allocation4 [shape = 's32[1]{0}', space=sflag, size = 0x4, scoped, tag = 'scoped memory for tpu_custom_call.1']
    #allocation5 [shape = 's32[1]{0}', space=sflag, size = 0x4, scoped, tag = 'scoped memory for tpu_custom_call.1']
    #allocation6 [shape = 'u8[2048]{0}', space=vmem, size = 0x800, scoped, tag = 'output window, operand 0, single buffered']
    %9 = vsyncpa [#allocation5], 0
    %10 = vsyncpa [#allocation4], 0
    // Predicated region
    $region2: #{tpu_custom_call.1} parent=1 // pred_check
      _
    $region3: #{tpu_custom_call.1} parent=1 // pred_check_branch
      %12 = sbr.rel (0) target = $region5
    $region4: #{tpu_custom_call.1} parent=1 // pred_region
      %s14 = ssub.s32 16, 16
      %15 = vsyncadd [#allocation5], %s14
      %s17 = sshll.u32 %s0, 4
      %s18 = int_to_ptr.vmem [resolvable:$true] %s17
      %20 = dma.vmem_to_smem %s18, 16, [#allocation3], [#allocation5]
    $region5: #{tpu_custom_call.1} parent=1 // pred_fallthru
      _
    // Predicated region
    $region6: #{tpu_custom_call.1} parent=1 // pred_check
      _
    $region7: #{tpu_custom_call.1} parent=1 // pred_check_branch
      %22 = sbr.rel (0) target = $region9
    $region8: #{tpu_custom_call.1} parent=1 // pred_region
      _
    $region9: #{tpu_custom_call.1} parent=1 // pred_fallthru
      _
    // Predicated region
    $region10: #{tpu_custom_call.1} parent=1 // pred_check
      _
    $region11: #{tpu_custom_call.1} parent=1 // pred_check_branch
      %24 = sbr.rel (0) target = $region13
    $region12: #{tpu_custom_call.1} parent=1 // pred_region
      _
    $region13: #{tpu_custom_call.1} parent=1 // pred_fallthru
      _
    // Predicated region
    $region14: #{tpu_custom_call.1} parent=1 // pred_check
      _
    $region15: #{tpu_custom_call.1} parent=1 // pred_check_branch
      %26 = sbr.rel (0) target = $region17
    $region16: #{tpu_custom_call.1} parent=1 // pred_region
      %27 = dma.done [#allocation5], 16
    $region17: #{tpu_custom_call.1} parent=1 // pred_fallthru
      _
    %28 = sfence
    %v29 = vld [vmem:[%s2] sm:$0x7]
    %s30 = sld [smem:[#allocation3]]
    %s31 = sld [smem:[#allocation2]]
    %s32 = sadd.f32 %s30, %s31
    %v33 = vstv %s32
    %v34 = vmul.f32 %v29, 3.1415927
    %v35 = vand.u32 2147483647, %v34
    %vm36 = vcmp.le.f32.partialorder %v35, 0.7853982
    %vm37 = vcmp.lt.s32.totalorder %v34, 0
    %v38 = vand.u32 %v34, 2139095040
    %v39 = vshrl.u32 %v38, 23
    %v40 = vsub.s32 %v39, 127
    %v41 = vand.u32 2147483647, %v34
    %v42 = vand.u32 %v41, 8388607
    %v43 = vor.u32 %v42, 8388608
    %v44 = vsub.s32 0, %v43
    %v45 = vadd.s32 %v40, 1
    %vm46 = vcmp.gt.s32.totalorder %v45, 0
    %v47 = vsel %vm46, %v45, 0
    %v48 = vshrl.u32 %v47, 5
    %v49 = vand.u32 %v47, 31
    %v50 = vsub.s32 32, %v49
    %v51 = vshrl.u32 683565275, %v50
    %v52 = vshll.u32 683565275, %v49
    %v53 = vshrl.u32 2475754826, %v50
    %v54 = vor.u32 %v52, %v53
    %v55 = vshll.u32 2475754826, %v49
    %v56 = vshrl.u32 2131351028, %v50
    %v57 = vor.u32 %v55, %v56
    %v58 = vshll.u32 2131351028, %v49
    %v59 = vshrl.u32 2102212464, %v50
    %v60 = vor.u32 %v58, %v59
    %v61 = vshll.u32 2102212464, %v49
    %v62 = vshrl.u32 920167782, %v50
    %v63 = vor.u32 %v61, %v62
    %v64 = vshll.u32 920167782, %v49
    %v65 = vshrl.u32 1326507024, %v50
    %v66 = vor.u32 %v64, %v65
    %vm67 = vcmp.lt.s32.totalorder %v48, 1
    %vm68 = vcmp.lt.s32.totalorder %v48, 2
    %vm69 = vcmp.lt.s32.totalorder %v48, 3
    %vm70 = vcmp.lt.s32.totalorder %v48, 4
    %v71 = vsel %vm67, %v51, %v54
    %v72 = vsel %vm70, %v60, 2102212464
    %v73 = vsel %vm69, %v57, %v72
    %v74 = vsel %vm68, %v71, %v73
    %v75 = vsel %vm67, %v54, %v57
    %v76 = vsel %vm70, %v63, 920167782
    %v77 = vsel %vm69, %v60, %v76
    %v78 = vsel %vm68, %v75, %v77
    %v79 = vsel %vm67, %v57, %v60
    %v80 = vsel %vm70, %v66, 1326507024
    %v81 = vsel %vm69, %v63, %v80
    %v82 = vsel %vm68, %v79, %v81
    %v83 = vshll.u32 %v43, 8
    %v84 = vmul.u32.u64.compose %v83, %v82
    %v85 = vextract.low.u32 %v84
    %v86 = vextract.high.u32 %v84
    %v87 = vmul.u32.u64.compose %v83, %v78
    %v88 = vextract.low.u32 %v87
    %v89 = vextract.high.u32 %v87
    %v90 = vmul.u32 %v83, %v74
    %v91 = vadd.s32 %v86, %v88
    %vm92 = vc.u32 %v86, %v88
    %v93 = vadd.s32 %v89, 1
    %v94 = vsel %vm92, %v93, %v89
    %v95 = vadd.s32 %v90, %v94
    %v96 = vadd.s32 %v95, 536870912
    %v97 = vshrl.u32 %v96, 30
    %v98 = vshll.u32 %v97, 30
    %v99 = vsub.s32 %v95, %v98
    %vm100 = vcmp.lt.s32.totalorder %v99, 0
    %v101 = vsub.s32 0, %v99
    %v102 = vsel %vm100, %v101, %v99
    %v103 = vclz %v102
    %v104 = vsub.s32 %v103, 2
    %vm105 = vcmp.gt.s32.totalorder 0, %v104
    %v106 = vsel %vm105, 0, %v104
    %v107 = vsub.s32 32, %v106
    %v108 = vshll.u32 %v99, %v106
    %v109 = vshrl.u32 %v91, %v107
    %v110 = vor.u32 %v108, %v109
    %v111 = vsub.s32 4294967266, %v106
    %v112 = vadd.s32 %v111, 127
    %v113 = vshll.u32 %v112, 23
    %v114 = vor.u32 4788187, %v113
    %v115 = vand.u32 2147483647, %v114
    %v117 = vcvt.s32.f32 %v110
    %v118 = vmul.f32 %v117, %v115
    %v119 = vxor.u32 %v118, 2147483648
    %v120 = vsel %vm37, %v119, %v118
    %v121 = vsub.s32 4, %v97
    %v122 = vsel %vm37, %v121, %v97
    %v123 = vsel %vm36, %v34, %v120
    %v124 = vsel %vm36, 0, %v122
    %v125 = vcosq.f32.pop %v123
    %v126 = vsinq.f32.pop %v123
    %vm127 = vweird.f32 %v34
    %v128 = vand.u32 %v124, 3
    %vm129 = vcmp.lt.s32.totalorder %v128, 2
    %vm130 = vcmp.eq.s32.totalorder %v128, 0
    %v131 = vxor.u32 %v126, 2147483648
    %v132 = vsel %vm130, %v125, %v131
    %vm133 = vcmp.eq.s32.totalorder %v128, 2
    %v134 = vxor.u32 %v125, 2147483648
    %v135 = vsel %vm133, %v134, %v126
    %v136 = vsel %vm129, %v132, %v135
    %v137 = vsel %vm127, nan, %v136
    %s138 = sld [smem:[#allocation3 + $0x1]]
    %v139 = vstv %s138
    %v140 = vmul.f32 %v139, %v137
    %v141 = vadd.f32 %v33, %v140
    %v142 = vadd.f32 %v137, %v137
    %v143 = vmul.f32 %v142, %v137
    %v144 = vsub.f32 %v143, 1.0
    %s145 = sld [smem:[#allocation3 + $0x2]]
    %v146 = vstv %s145
    %v147 = vmul.f32 %v146, %v144
    %v148 = vadd.f32 %v141, %v147
    %v149 = vmul.f32 %v142, %v144
    %v150 = vsub.f32 %v149, %v137
    %s151 = sld [smem:[#allocation3 + $0x3]]
    %v152 = vstv %s151
    %v153 = vmul.f32 %v152, %v150
    %v154 = vadd.f32 %v148, %v153
    %v155 = vmul.f32 %v142, %v150
    %v156 = vsub.f32 %v155, %v144
    %s157 = sld [smem:[#allocation3 + $0x4]]
    %v158 = vstv %s157
    %v159 = vmul.f32 %v158, %v156
    %v160 = vadd.f32 %v154, %v159
    %v161 = vmul.f32 %v142, %v156
    %v162 = vsub.f32 %v161, %v150
    %s163 = sld [smem:[#allocation3 + $0x5]]
    %v164 = vstv %s163
    %v165 = vmul.f32 %v164, %v162
    %v166 = vadd.f32 %v160, %v165
    %v167 = vmul.f32 %v142, %v162
    %v168 = vsub.f32 %v167, %v156
    %s169 = sld [smem:[#allocation3 + $0x6]]
    %v170 = vstv %s169
    %v171 = vmul.f32 %v170, %v168
    %v172 = vadd.f32 %v166, %v171
    %v173 = vmul.f32 %v142, %v168
    %v174 = vsub.f32 %v173, %v162
    %s175 = sld [smem:[#allocation3 + $0x7]]
    %v176 = vstv %s175
    %v177 = vmul.f32 %v176, %v174
    %v178 = vadd.f32 %v172, %v177
    %v179 = vmul.f32 %v142, %v174
    %v180 = vsub.f32 %v179, %v168
    %s181 = sld [smem:[#allocation3 + $0x8]]
    %v182 = vstv %s181
    %v183 = vmul.f32 %v182, %v180
    %v184 = vadd.f32 %v178, %v183
    %v185 = vmul.f32 %v142, %v180
    %v186 = vsub.f32 %v185, %v174
    %s187 = sld [smem:[#allocation3 + $0x9]]
    %v188 = vstv %s187
    %v189 = vmul.f32 %v188, %v186
    %v190 = vadd.f32 %v184, %v189
    %v191 = vmul.f32 %v142, %v186
    %v192 = vsub.f32 %v191, %v180
    %s193 = sld [smem:[#allocation3 + $0xa]]
    %v194 = vstv %s193
    %v195 = vmul.f32 %v194, %v192
    %v196 = vadd.f32 %v190, %v195
    %v197 = vmul.f32 %v142, %v192
    %v198 = vsub.f32 %v197, %v186
    %s199 = sld [smem:[#allocation3 + $0xb]]
    %v200 = vstv %s199
    %v201 = vmul.f32 %v200, %v198
    %v202 = vadd.f32 %v196, %v201
    %v203 = vmul.f32 %v142, %v198
    %v204 = vsub.f32 %v203, %v192
    %s205 = sld [smem:[#allocation3 + $0xc]]
    %v206 = vstv %s205
    %v207 = vmul.f32 %v206, %v204
    %v208 = vadd.f32 %v202, %v207
    %v209 = vmul.f32 %v142, %v204
    %v210 = vsub.f32 %v209, %v198
    %s211 = sld [smem:[#allocation3 + $0xd]]
    %v212 = vstv %s211
    %v213 = vmul.f32 %v212, %v210
    %v214 = vadd.f32 %v208, %v213
    %v215 = vmul.f32 %v142, %v210
    %v216 = vsub.f32 %v215, %v204
    %s217 = sld [smem:[#allocation3 + $0xe]]
    %v218 = vstv %s217
    %v219 = vmul.f32 %v218, %v216
    %v220 = vadd.f32 %v214, %v219
    %v221 = vmul.f32 %v142, %v216
    %v222 = vsub.f32 %v221, %v210
    %s223 = sld [smem:[#allocation3 + $0xf]]
    %v224 = vstv %s223
    %v225 = vmul.f32 %v224, %v222
    %v226 = vadd.f32 %v220, %v225
    %v227 = vmul.f32 %v142, %v222
    %v228 = vsub.f32 %v227, %v216
    %s229 = sld [smem:[#allocation3 + $0x10]]
    %v230 = vstv %s229
    %v231 = vmul.f32 %v230, %v228
    %v232 = vadd.f32 %v226, %v231
    %v233 = vmul.f32 %v142, %v228
    %v234 = vsub.f32 %v233, %v222
    %s235 = sld [smem:[#allocation3 + $0x11]]
    %v236 = vstv %s235
    %v237 = vmul.f32 %v236, %v234
    %v238 = vadd.f32 %v232, %v237
    %v239 = vmul.f32 %v142, %v234
    %v240 = vsub.f32 %v239, %v228
    %s241 = sld [smem:[#allocation3 + $0x12]]
    %v242 = vstv %s241
    %v243 = vmul.f32 %v242, %v240
    %v244 = vadd.f32 %v238, %v243
    %v245 = vmul.f32 %v142, %v240
    %v246 = vsub.f32 %v245, %v234
    %s247 = sld [smem:[#allocation3 + $0x13]]
    %v248 = vstv %s247
    %v249 = vmul.f32 %v248, %v246
    %v250 = vadd.f32 %v244, %v249
    %v251 = vmul.f32 %v142, %v246
    %v252 = vsub.f32 %v251, %v240
    %s253 = sld [smem:[#allocation3 + $0x14]]
    %v254 = vstv %s253
    %v255 = vmul.f32 %v254, %v252
    %v256 = vadd.f32 %v250, %v255
    %v257 = vmul.f32 %v142, %v252
    %v258 = vsub.f32 %v257, %v246
    %s259 = sld [smem:[#allocation3 + $0x15]]
    %v260 = vstv %s259
    %v261 = vmul.f32 %v260, %v258
    %v262 = vadd.f32 %v256, %v261
    %v263 = vmul.f32 %v142, %v258
    %v264 = vsub.f32 %v263, %v252
    %s265 = sld [smem:[#allocation3 + $0x16]]
    %v266 = vstv %s265
    %v267 = vmul.f32 %v266, %v264
    %v268 = vadd.f32 %v262, %v267
    %v269 = vmul.f32 %v142, %v264
    %v270 = vsub.f32 %v269, %v258
    %s271 = sld [smem:[#allocation3 + $0x17]]
    %v272 = vstv %s271
    %v273 = vmul.f32 %v272, %v270
    %v274 = vadd.f32 %v268, %v273
    %v275 = vmul.f32 %v142, %v270
    %v276 = vsub.f32 %v275, %v264
    %s277 = sld [smem:[#allocation3 + $0x18]]
    %v278 = vstv %s277
    %v279 = vmul.f32 %v278, %v276
    %v280 = vadd.f32 %v274, %v279
    %v281 = vmul.f32 %v142, %v276
    %v282 = vsub.f32 %v281, %v270
    %s283 = sld [smem:[#allocation3 + $0x19]]
    %v284 = vstv %s283
    %v285 = vmul.f32 %v284, %v282
    %v286 = vadd.f32 %v280, %v285
    %v287 = vmul.f32 %v142, %v282
    %v288 = vsub.f32 %v287, %v276
    %s289 = sld [smem:[#allocation3 + $0x1a]]
    %v290 = vstv %s289
    %v291 = vmul.f32 %v290, %v288
    %v292 = vadd.f32 %v286, %v291
    %v293 = vmul.f32 %v142, %v288
    %v294 = vsub.f32 %v293, %v282
    %s295 = sld [smem:[#allocation3 + $0x1b]]
    %v296 = vstv %s295
    %v297 = vmul.f32 %v296, %v294
    %v298 = vadd.f32 %v292, %v297
    %v299 = vmul.f32 %v142, %v294
    %v300 = vsub.f32 %v299, %v288
    %s301 = sld [smem:[#allocation3 + $0x1c]]
    %v302 = vstv %s301
    %v303 = vmul.f32 %v302, %v300
    %v304 = vadd.f32 %v298, %v303
    %v305 = vmul.f32 %v142, %v300
    %v306 = vsub.f32 %v305, %v294
    %s307 = sld [smem:[#allocation3 + $0x1d]]
    %v308 = vstv %s307
    %v309 = vmul.f32 %v308, %v306
    %v310 = vadd.f32 %v304, %v309
    %v311 = vmul.f32 %v142, %v306
    %v312 = vsub.f32 %v311, %v300
    %s313 = sld [smem:[#allocation3 + $0x1e]]
    %v314 = vstv %s313
    %v315 = vmul.f32 %v314, %v312
    %v316 = vadd.f32 %v310, %v315
    %v317 = vmul.f32 %v142, %v312
    %v318 = vsub.f32 %v317, %v306
    %s319 = sld [smem:[#allocation3 + $0x1f]]
    %v320 = vstv %s319
    %v321 = vmul.f32 %v320, %v318
    %v322 = vadd.f32 %v316, %v321
    %v323 = vmul.f32 %v142, %v318
    %v324 = vsub.f32 %v323, %v312
    %s325 = sld [smem:[#allocation3 + $0x20]]
    %v326 = vstv %s325
    %v327 = vmul.f32 %v326, %v324
    %v328 = vadd.f32 %v322, %v327
    %v329 = vxor.u32 %v328, 2147483648
    %v330 = vmul.f32 %v329, 1.442695
    %v331 = vpow.pop %v330
    %v332 = vadd.f32 %v331, 1.0
    %v333 = vrcp.pop %v332
    %v334 = vmul.f32 1.0, %v333
    %335 = vst [vmem:[#allocation6] sm:$0x7] %v334
    // Predicated region
    $region18: #{tpu_custom_call.1} parent=1 // pred_check
      _
    $region19: #{tpu_custom_call.1} parent=1 // pred_check_branch
      %337 = sbr.rel (0) target = $region21
    $region20: #{tpu_custom_call.1} parent=1 // pred_region
      %s339 = ssub.s32 64, 64
      %340 = vsyncadd [#allocation4], %s339
      %s342 = sshll.u32 [#allocation6], 4
      %s343 = int_to_ptr.vmem [resolvable:$true] %s342
      %345 = dma.vmem_to_hbm [thread:$0]  %s343, 64, %s3, [#allocation4]
    $region21: #{tpu_custom_call.1} parent=1 // pred_fallthru
      _
    // Predicated region
    $region22: #{tpu_custom_call.1} parent=1 // pred_check
      _
    $region23: #{tpu_custom_call.1} parent=1 // pred_check_branch
      %347 = sbr.rel (0) target = $region25
    $region24: #{tpu_custom_call.1} parent=1 // pred_region
      %348 = dma.done [#allocation4], 64
    $region25: #{tpu_custom_call.1} parent=1 // pred_fallthru
      _
    %349 = vsyncpa [#allocation4], 1
    %350 = vsyncpa [#allocation5], 1

</llo_original>
